<compile_context>
chip_gen: v7x
topology: tpu7x:2x2x1
jax: 0.10.0
libtpu: 0.0.40
codegen_flags: <defaults>
</compile_context>

<pallas_src>
import functools

import jax
import jax.numpy as jnp
from jax.experimental import pallas as pl
from jax.experimental.pallas import tpu as pltpu

IN_DIM = 7      # FK=True -> input dim 7
H1 = 32
H2 = 32
OUT_DIM = 9     # FK=True -> output dim 9


def _round_up(x, m):
    return ((x + m - 1) // m) * m


def mlp_sse_kernel(x_ref, y_ref,
                   w1_ref, b1_ref, w2_ref, b2_ref, w3_ref, b3_ref,
                   sse_ref, *, tile_rows, n_valid_rows):
    """Fused MLP forward + per-tile sum of squared errors (one grid program = one batch tile)."""
    # bf16 inputs -> upcast immediately; all compute stays f32.
    x = x_ref[...].astype(jnp.float32)

    # Linear(7 -> 32) + ReLU
    h = jnp.dot(x, w1_ref[...], preferred_element_type=jnp.float32) + b1_ref[...]
    h = jnp.maximum(h, 0.0)
    # Linear(32 -> 32) + ReLU
    h = jnp.dot(h, w2_ref[...], preferred_element_type=jnp.float32) + b2_ref[...]
    h = jnp.maximum(h, 0.0)
    # Linear(32 -> 9), activate_last=False => no activation
    pred = jnp.dot(h, w3_ref[...], preferred_element_type=jnp.float32) + b3_ref[...]

    diff = pred - y_ref[...].astype(jnp.float32)

    # Mask rows beyond the true batch size (zero-padded tail of the last tile).
    row = (jax.lax.broadcasted_iota(jnp.int32, diff.shape, 0)
           + pl.program_id(0) * tile_rows)
    diff = jnp.where(row < n_valid_rows, diff, 0.0)

    # Per-program partial SSE; the mean (x 1/N_global) is applied in the wrapper.
    sse_ref[0, 0] = jnp.sum(diff * diff)


def mlp_total_loss(x, y, params, *, tile_rows=1024):
    """batch['input'] -> net -> F.mse_loss(net(x), batch['output'])."""
    w1, b1, w2, b2, w3, b3 = params
    B = x.shape[0]
    n_elems = B * y.shape[1]

    # Batch tile: multiple of 16 (bf16 sublane packing); large tiles amortize the
    # ~0.35us per-grid-step overhead; clamp for tiny demo batches.
    tb = min(tile_rows, _round_up(max(B, 1), 16))
    b_pad = _round_up(B, tb)
    num_tiles = b_pad // tb

    # bf16 halves HBM traffic for the only large operands (x, y); weights stay f32.
    x16 = jnp.pad(x.astype(jnp.bfloat16), ((0, b_pad - B), (0, 0)))
    y16 = jnp.pad(y.astype(jnp.bfloat16), ((0, b_pad - B), (0, 0)))

    kernel = functools.partial(mlp_sse_kernel, tile_rows=tb, n_valid_rows=B)

    def resident(shape):   # weights/biases: DMA'd once, resident across all tiles
        return pl.BlockSpec(shape, lambda i: (0, 0))

    partials = pl.pallas_call(
        kernel,
        out_shape=jax.ShapeDtypeStruct((num_tiles, 1), jnp.float32),
        grid=(num_tiles,),
        in_specs=[
            # x / y advance with the batch grid index (auto double-buffered).
            # TODO(synk): optionally pipeline_mode=pl.Buffered(3) if VMEM headroom allows.
            pl.BlockSpec((tb, IN_DIM), lambda i: (i, 0)),
            pl.BlockSpec((tb, OUT_DIM), lambda i: (i, 0)),
            resident((IN_DIM, H1)), resident((1, H1)),
            resident((H1, H2)), resident((1, H2)),
            resident((H2, OUT_DIM)), resident((1, OUT_DIM)),
        ],
        # One SMEM scalar per grid program -> no cross-step accumulator, so the
        # batch axis can be truly "parallel" (megacore sharding on v7x).
        out_specs=pl.BlockSpec((1, 1), lambda i: (i, 0),
                               memory_space=pltpu.MemorySpace.SMEM),
        compiler_params=pltpu.CompilerParams(
            dimension_semantics=("parallel",)),
    )(x16, y16, w1, b1, w2, b2, w3, b3)

    # Final f32 reduction + multiply by 1/N using the TRUE total element count.
    loss = jnp.sum(partials, dtype=jnp.float32) * jnp.float32(1.0 / n_elems)
    return {'total_loss': loss}


def init_params(key):
    """Deterministic init mimicking nn.Linear's uniform(-1/sqrt(fan_in), +)."""
    dims = [(IN_DIM, H1), (H1, H2), (H2, OUT_DIM)]
    params = []
    for (fan_in, fan_out) in dims:
        key, kw, kb = jax.random.split(key, 3)
        bound = 1.0 / jnp.sqrt(jnp.float32(fan_in))
        w = jax.random.uniform(kw, (fan_in, fan_out), jnp.float32, -bound, bound)
        b = jax.random.uniform(kb, (1, fan_out), jnp.float32, -bound, bound)
        params += [w, b]
    return tuple(params)


def mlp_loss_ref(x, y, params):
    """Pure-JAX reference (all-f32 compute) for a correctness sanity check."""
    w1, b1, w2, b2, w3, b3 = params
    h = jnp.maximum(x @ w1 + b1, 0.0)
    h = jnp.maximum(h @ w2 + b2, 0.0)
    pred = h @ w3 + b3
    return jnp.mean((pred - y) ** 2)


if __name__ == "__main__":
    key = jax.random.PRNGKey(0)
    kp, _ = jax.random.split(key)
    params = init_params(kp)

    def check(B, tile_rows):
        kxb, kyb = jax.random.split(jax.random.fold_in(key, B))
        x = jax.random.normal(kxb, (B, IN_DIM), jnp.float32)   # batch['input']
        y = jax.random.normal(kyb, (B, OUT_DIM), jnp.float32)  # batch['output']

        out = mlp_total_loss(x, y, params, tile_rows=tile_rows)
        loss = jax.block_until_ready(out['total_loss'])

        # Reference on the same bf16-rounded inputs (compute in f32).
        xr = x.astype(jnp.bfloat16).astype(jnp.float32)
        yr = y.astype(jnp.bfloat16).astype(jnp.float32)
        ref = mlp_loss_ref(xr, yr, params)
        assert jnp.allclose(loss, ref, rtol=1e-4, atol=1e-5), (B, loss, ref)

    check(8, 1024)   # single tile
    check(40, 16)    # multi-tile grid + ragged (masked) last tile

    print("KERNEL_OK")
</pallas_src>

<mosaic_0001>
module attributes {stable_mosaic.version = 11 : i64} {
  func.func @mlp_sse_kernel(%arg0: i32, %arg1: memref<16x7xbf16, #tpu.memory_space<vmem>>, %arg2: memref<16x9xbf16, #tpu.memory_space<vmem>>, %arg3: memref<7x32xf32, #tpu.memory_space<vmem>>, %arg4: memref<1x32xf32, #tpu.memory_space<vmem>>, %arg5: memref<32x32xf32, #tpu.memory_space<vmem>>, %arg6: memref<1x32xf32, #tpu.memory_space<vmem>>, %arg7: memref<32x9xf32, #tpu.memory_space<vmem>>, %arg8: memref<1x9xf32, #tpu.memory_space<vmem>>, %arg9: memref<1x1xf32, #tpu.memory_space<smem>>) attributes {dimension_semantics = [#tpu.dimension_semantics<parallel>], iteration_bounds = array<i64: 1>, scalar_prefetch = 0 : i64, scratch_operands = 0 : i64, tpu.core_type = #tpu.core_type<tc>, window_params = [{transform_indices = @transform_0, window_bounds = array<i64: 16, 7>}, {transform_indices = @transform_1, window_bounds = array<i64: 16, 9>}, {pipeline_mode = #tpu.pipeline_mode<synchronous>, transform_indices = @transform_2, window_bounds = array<i64: 7, 32>}, {pipeline_mode = #tpu.pipeline_mode<synchronous>, transform_indices = @transform_3, window_bounds = array<i64: 1, 32>}, {pipeline_mode = #tpu.pipeline_mode<synchronous>, transform_indices = @transform_4, window_bounds = array<i64: 32, 32>}, {pipeline_mode = #tpu.pipeline_mode<synchronous>, transform_indices = @transform_5, window_bounds = array<i64: 1, 32>}, {pipeline_mode = #tpu.pipeline_mode<synchronous>, transform_indices = @transform_6, window_bounds = array<i64: 32, 9>}, {pipeline_mode = #tpu.pipeline_mode<synchronous>, transform_indices = @transform_7, window_bounds = array<i64: 1, 9>}, {transform_indices = @transform_8, window_bounds = array<i64: 1, 1>}]} {
    %c0 = arith.constant 0 : index
    %c0_0 = arith.constant 0 : index
    %0 = vector.load %arg1[%c0, %c0_0] : memref<16x7xbf16, #tpu.memory_space<vmem>>, vector<16x7xbf16>
    %1 = arith.extf %0 : vector<16x7xbf16> to vector<16x7xf32>
    %c0_1 = arith.constant 0 : index
    %c0_2 = arith.constant 0 : index
    %2 = vector.load %arg3[%c0_1, %c0_2] : memref<7x32xf32, #tpu.memory_space<vmem>>, vector<7x32xf32>
    %cst = arith.constant dense<0.000000e+00> : vector<16x32xf32>
    %3 = tpu.matmul %1, %2, %cst {dimension_numbers = #tpu.dot_dimension_numbers<[1], [0], [0], [1], [0, 0, 1, 1], [], []>} : vector<16x7xf32>, vector<7x32xf32>, vector<16x32xf32> -> vector<16x32xf32>
    %c0_3 = arith.constant 0 : index
    %c0_4 = arith.constant 0 : index
    %4 = vector.load %arg4[%c0_3, %c0_4] : memref<1x32xf32, #tpu.memory_space<vmem>>, vector<1x32xf32>
    %5 = vector.broadcast %4 : vector<1x32xf32> to vector<16x32xf32>
    %6 = arith.addf %3, %5 : vector<16x32xf32>
    %cst_5 = arith.constant 0.000000e+00 : f32
    %7 = vector.broadcast %cst_5 : f32 to vector<16x32xf32>
    %8 = arith.maximumf %6, %7 : vector<16x32xf32>
    %c0_6 = arith.constant 0 : index
    %c0_7 = arith.constant 0 : index
    %9 = vector.load %arg5[%c0_6, %c0_7] : memref<32x32xf32, #tpu.memory_space<vmem>>, vector<32x32xf32>
    %cst_8 = arith.constant dense<0.000000e+00> : vector<16x32xf32>
    %10 = tpu.matmul %8, %9, %cst_8 {dimension_numbers = #tpu.dot_dimension_numbers<[1], [0], [0], [1], [0, 0, 1, 1], [], []>} : vector<16x32xf32>, vector<32x32xf32>, vector<16x32xf32> -> vector<16x32xf32>
    %c0_9 = arith.constant 0 : index
    %c0_10 = arith.constant 0 : index
    %11 = vector.load %arg6[%c0_9, %c0_10] : memref<1x32xf32, #tpu.memory_space<vmem>>, vector<1x32xf32>
    %12 = vector.broadcast %11 : vector<1x32xf32> to vector<16x32xf32>
    %13 = arith.addf %10, %12 : vector<16x32xf32>
    %cst_11 = arith.constant 0.000000e+00 : f32
    %14 = vector.broadcast %cst_11 : f32 to vector<16x32xf32>
    %15 = arith.maximumf %13, %14 : vector<16x32xf32>
    %c0_12 = arith.constant 0 : index
    %c0_13 = arith.constant 0 : index
    %16 = vector.load %arg7[%c0_12, %c0_13] : memref<32x9xf32, #tpu.memory_space<vmem>>, vector<32x9xf32>
    %cst_14 = arith.constant dense<0.000000e+00> : vector<16x9xf32>
    %17 = tpu.matmul %15, %16, %cst_14 {dimension_numbers = #tpu.dot_dimension_numbers<[1], [0], [0], [1], [0, 0, 1, 1], [], []>} : vector<16x32xf32>, vector<32x9xf32>, vector<16x9xf32> -> vector<16x9xf32>
    %c0_15 = arith.constant 0 : index
    %c0_16 = arith.constant 0 : index
    %18 = vector.load %arg8[%c0_15, %c0_16] : memref<1x9xf32, #tpu.memory_space<vmem>>, vector<1x9xf32>
    %19 = vector.broadcast %18 : vector<1x9xf32> to vector<16x9xf32>
    %20 = arith.addf %17, %19 : vector<16x9xf32>
    %c0_17 = arith.constant 0 : index
    %c0_18 = arith.constant 0 : index
    %21 = vector.load %arg2[%c0_17, %c0_18] : memref<16x9xbf16, #tpu.memory_space<vmem>>, vector<16x9xbf16>
    %22 = arith.extf %21 : vector<16x9xbf16> to vector<16x9xf32>
    %23 = arith.subf %20, %22 : vector<16x9xf32>
    %24 = tpu.iota {dimensions = array<i32: 0>} : vector<16x9xi32>
    %c16_i32 = arith.constant 16 : i32
    %25 = arith.muli %arg0, %c16_i32 : i32
    %26 = vector.broadcast %25 : i32 to vector<16x9xi32>
    %27 = arith.addi %24, %26 : vector<16x9xi32>
    %c8_i32 = arith.constant 8 : i32
    %28 = vector.broadcast %c8_i32 : i32 to vector<16x9xi32>
    %29 = arith.cmpi slt, %27, %28 : vector<16x9xi32>
    %cst_19 = arith.constant 0.000000e+00 : f32
    %30 = vector.broadcast %cst_19 : f32 to vector<16x9xf32>
    %31 = arith.select %29, %23, %30 : vector<16x9xi1>, vector<16x9xf32>
    %32 = arith.mulf %31, %31 : vector<16x9xf32>
    %33 = vector.shape_cast %32 : vector<16x9xf32> to vector<1x16x9xf32>
    %cst_20 = arith.constant dense<0.000000e+00> : vector<1xf32>
    %34 = vector.multi_reduction <add>, %33, %cst_20 [1, 2] : vector<1x16x9xf32> to vector<1xf32>
    %35 = vector.shape_cast %34 : vector<1xf32> to vector<1x1x1xf32>
    %36 = vector.extract %35[0, 0, 0] : f32 from vector<1x1x1xf32>
    %c0_21 = arith.constant 0 : index
    %c0_22 = arith.constant 0 : index
    %37 = memref.load %arg9[%c0_21, %c0_22] : memref<1x1xf32, #tpu.memory_space<smem>>
    memref.store %36, %arg9[%c0_21, %c0_22] : memref<1x1xf32, #tpu.memory_space<smem>>
    return
  }
  func.func @transform_0(%arg0: i32) -> (i32, i32) {
    %c0_i32 = arith.constant 0 : i32
    %c0_i32_0 = arith.constant 0 : i32
    return %arg0, %c0_i32 : i32, i32
  }
  func.func @transform_1(%arg0: i32) -> (i32, i32) {
    %c0_i32 = arith.constant 0 : i32
    %c0_i32_0 = arith.constant 0 : i32
    return %arg0, %c0_i32 : i32, i32
  }
  func.func @transform_2(%arg0: i32) -> (i32, i32) {
    %c0_i32 = arith.constant 0 : i32
    %c0_i32_0 = arith.constant 0 : i32
    %c0_i32_1 = arith.constant 0 : i32
    return %c0_i32, %c0_i32_0 : i32, i32
  }
  func.func @transform_3(%arg0: i32) -> (i32, i32) {
    %c0_i32 = arith.constant 0 : i32
    %c0_i32_0 = arith.constant 0 : i32
    %c0_i32_1 = arith.constant 0 : i32
    return %c0_i32, %c0_i32_0 : i32, i32
  }
  func.func @transform_4(%arg0: i32) -> (i32, i32) {
    %c0_i32 = arith.constant 0 : i32
    %c0_i32_0 = arith.constant 0 : i32
    %c0_i32_1 = arith.constant 0 : i32
    return %c0_i32, %c0_i32_0 : i32, i32
  }
  func.func @transform_5(%arg0: i32) -> (i32, i32) {
    %c0_i32 = arith.constant 0 : i32
    %c0_i32_0 = arith.constant 0 : i32
    %c0_i32_1 = arith.constant 0 : i32
    return %c0_i32, %c0_i32_0 : i32, i32
  }
  func.func @transform_6(%arg0: i32) -> (i32, i32) {
    %c0_i32 = arith.constant 0 : i32
    %c0_i32_0 = arith.constant 0 : i32
    %c0_i32_1 = arith.constant 0 : i32
    return %c0_i32, %c0_i32_0 : i32, i32
  }
  func.func @transform_7(%arg0: i32) -> (i32, i32) {
    %c0_i32 = arith.constant 0 : i32
    %c0_i32_0 = arith.constant 0 : i32
    %c0_i32_1 = arith.constant 0 : i32
    return %c0_i32, %c0_i32_0 : i32, i32
  }
  func.func @transform_8(%arg0: i32) -> (i32, i32) {
    %c0_i32 = arith.constant 0 : i32
    %c0_i32_0 = arith.constant 0 : i32
    return %arg0, %c0_i32 : i32, i32
  }
}

</mosaic_0001>

<llo_original>
// kernel: tpu_custom_call.1
$region0: #{tpu_custom_call.1}
  #allocation0 [shape = 'u32[]', space=smem, size = 0x4, offset = 0x4, fixed_abs, tag = 'smem constant byte address 0x4 - core index']
  #allocation1 [shape = 'u32[144,128]{1,0:T(1,128)}', space=vmem, size = 0x12000, scoped, tag = 'internal scratch']
  %s0 = inlined_call_operand.vmem [shape: bf16[16,7], index: 0, kind: input, shape index: {}]
  %s1 = inlined_call_operand.vmem [shape: bf16[16,9], index: 1, kind: input, shape index: {}]
  %s2 = inlined_call_operand.vmem [shape: f32[7,32], index: 2, kind: input, shape index: {}]
  %s3 = inlined_call_operand.vmem [shape: f32[1,32], index: 3, kind: input, shape index: {}]
  %s4 = inlined_call_operand.vmem [shape: f32[32,32], index: 4, kind: input, shape index: {}]
  %s5 = inlined_call_operand.vmem [shape: f32[1,32], index: 5, kind: input, shape index: {}]
  %s6 = inlined_call_operand.vmem [shape: f32[32,9], index: 6, kind: input, shape index: {}]
  %s7 = inlined_call_operand.vmem [shape: f32[1,9], index: 7, kind: input, shape index: {}]
  %s8 = inlined_call_operand.hbm [shape: f32[1,1], index: 8, kind: output, shape index: {}]
  %s9 = sld [smem:[#allocation0]]
  $region42: #{tpu_custom_call.1} parent=0
    _
  %s11 = ssub.s32 1, %s9
  %s12 = scalar_select 0, %s11, %s9
  $region1: #{tpu_custom_call.1} parent=0
    #allocation2 [shape = 'u8[512]{0}', space=smem, size = 0x200, scoped, tag = 'output window, operand 0, single buffered']
    #allocation3 [shape = 's32[1]{0}', space=sflag, size = 0x4, scoped, tag = 'scoped memory for tpu_custom_call.1']
    %13 = vsyncpa [#allocation3], 0
    // Predicated region
    $region2: #{tpu_custom_call.1} parent=1 // pred_check
      _
    $region3: #{tpu_custom_call.1} parent=1 // pred_check_branch
      %15 = sbr.rel (0) target = $region5
    $region4: #{tpu_custom_call.1} parent=1 // pred_region
      _
    $region5: #{tpu_custom_call.1} parent=1 // pred_fallthru
      _
    // Predicated region
    $region6: #{tpu_custom_call.1} parent=1 // pred_check
      _
    $region7: #{tpu_custom_call.1} parent=1 // pred_check_branch
      %17 = sbr.rel (0) target = $region9
    $region8: #{tpu_custom_call.1} parent=1 // pred_region
      _
    $region9: #{tpu_custom_call.1} parent=1 // pred_fallthru
      _
    // Predicated region
    $region10: #{tpu_custom_call.1} parent=1 // pred_check
      _
    $region11: #{tpu_custom_call.1} parent=1 // pred_check_branch
      %19 = sbr.rel (0) target = $region13
    $region12: #{tpu_custom_call.1} parent=1 // pred_region
      _
    $region13: #{tpu_custom_call.1} parent=1 // pred_fallthru
      _
    // Predicated region
    $region14: #{tpu_custom_call.1} parent=1 // pred_check
      _
    $region15: #{tpu_custom_call.1} parent=1 // pred_check_branch
      %21 = sbr.rel (0) target = $region17
    $region16: #{tpu_custom_call.1} parent=1 // pred_region
      _
    $region17: #{tpu_custom_call.1} parent=1 // pred_fallthru
      _
    // Predicated region
    $region18: #{tpu_custom_call.1} parent=1 // pred_check
      _
    $region19: #{tpu_custom_call.1} parent=1 // pred_check_branch
      %23 = sbr.rel (0) target = $region21
    $region20: #{tpu_custom_call.1} parent=1 // pred_region
      _
    $region21: #{tpu_custom_call.1} parent=1 // pred_fallthru
      _
    // Predicated region
    $region22: #{tpu_custom_call.1} parent=1 // pred_check
      _
    $region23: #{tpu_custom_call.1} parent=1 // pred_check_branch
      %25 = sbr.rel (0) target = $region25
    $region24: #{tpu_custom_call.1} parent=1 // pred_region
      _
    $region25: #{tpu_custom_call.1} parent=1 // pred_fallthru
      _
    // Predicated region
    $region26: #{tpu_custom_call.1} parent=1 // pred_check
      _
    $region27: #{tpu_custom_call.1} parent=1 // pred_check_branch
      %27 = sbr.rel (0) target = $region29
    $region28: #{tpu_custom_call.1} parent=1 // pred_region
      _
    $region29: #{tpu_custom_call.1} parent=1 // pred_fallthru
      _
    // Predicated region
    $region30: #{tpu_custom_call.1} parent=1 // pred_check
      _
    $region31: #{tpu_custom_call.1} parent=1 // pred_check_branch
      %29 = sbr.rel (0) target = $region33
    $region32: #{tpu_custom_call.1} parent=1 // pred_region
      _
    $region33: #{tpu_custom_call.1} parent=1 // pred_fallthru
      _
    %v30 = vld [vmem:[%s0] sm:$0xf]
    %v31 = vld [vmem:[%s0 + $0x4] sm:$0xf]
    %v32 = vunpack.c.l.bf16 %v30
    %v33 = vunpack.c.l.bf16 %v31
    %v34 = vld [vmem:[%s2] sm:$0x7f]
    %v35 = vld [vmem:[%s3] sm:$0x1]
    %v37 = vlaneseq
    %v38 = vshrl.u32 %v37, 7
    %v39 = vsub.s32 0, %v38
    %v40 = vrot.slane %v35, %v39
    %vm42 = vcmask 56320
    %v44 = vsel %vm42, %v32, 0
    %v47 = vsel %vm42, %v33, 0
    %vm49 = vcmask 1046528
    %v51 = vsel %vm49, %v34, 0
    %53 = vmatprep.subr.mxu0 0.0
    %54 = vmatpush1.msra.mxu0 %v51
    %55 = vmatprep.subr.mxu0 0.0
    %56 = vmatpush1.msra.mxu0 0.0
    %57 = vmatprep.subr.mxu0 0.0
    %58 = vmatpush1.msra.mxu0 0.0
    %59 = vmatprep.subr.mxu0 0.0
    %60 = vmatpush1.msra.mxu0 0.0
    %61 = vmatprep.subr.mxu0 0.0
    %62 = vmatpush1.msra.mxu0 0.0
    %63 = vmatprep.subr.mxu0 0.0
    %64 = vmatpush1.msra.mxu0 0.0
    %65 = vmatprep.subr.mxu0 0.0
    %66 = vmatpush1.msra.mxu0 0.0
    %67 = vmatprep.subr.mxu0 0.0
    %68 = vmatpush1.msra.mxu0 0.0
    %69 = vmatprep.subr.mxu0 0.0
    %70 = vmatpush1.msra.mxu0 0.0
    %71 = vmatprep.subr.mxu0 0.0
    %72 = vmatpush1.msra.mxu0 0.0
    %73 = vmatprep.subr.mxu0 0.0
    %74 = vmatpush1.msra.mxu0 0.0
    %75 = vmatprep.subr.mxu0 0.0
    %76 = vmatpush1.msra.mxu0 0.0
    %77 = vmatprep.subr.mxu0 0.0
    %78 = vmatpush1.msra.mxu0 0.0
    %79 = vmatprep.subr.mxu0 0.0
    %80 = vmatpush1.msra.mxu0 0.0
    %81 = vmatprep.subr.mxu0 0.0
    %82 = vmatpush1.msra.mxu0 0.0
    %83 = vmatprep.subr.mxu0 0.0
    %84 = vmatpush1.msra.mxu0 0.0
    %85 = vmatprep.subr.mxu0 0.0
    %86 = vmatpush1.msra.mxu0 0.0
    %87 = vmatprep.subr.mxu0 0.0
    %88 = vmatpush1.msra.mxu0 0.0
    %89 = vmatprep.subr.mxu0 0.0
    %90 = vmatpush1.msra.mxu0 0.0
    %91 = vmatprep.subr.mxu0 0.0
    %92 = vmatpush1.msra.mxu0 0.0
    %93 = vmatprep.subr.mxu0 0.0
    %94 = vmatpush1.msra.mxu0 0.0
    %95 = vmatprep.subr.mxu0 0.0
    %96 = vmatpush1.msra.mxu0 0.0
    %97 = vmatprep.subr.mxu0 0.0
    %98 = vmatpush1.msra.mxu0 0.0
    %99 = vmatprep.subr.mxu0 0.0
    %100 = vmatpush1.msra.mxu0 0.0
    %101 = vmatprep.subr.mxu0 0.0
    %102 = vmatpush1.msra.mxu0 0.0
    %103 = vmatprep.subr.mxu0 0.0
    %104 = vmatpush1.msra.mxu0 0.0
    %105 = vmatprep.subr.mxu0 0.0
    %106 = vmatpush1.msra.mxu0 0.0
    %107 = vmatprep.subr.mxu0 0.0
    %108 = vmatpush1.msra.mxu0 0.0
    %109 = vmatprep.subr.mxu0 0.0
    %110 = vmatpush1.msra.mxu0 0.0
    %111 = vmatprep.subr.mxu0 0.0
    %112 = vmatpush1.msra.mxu0 0.0
    %113 = vmatprep.subr.mxu0 0.0
    %114 = vmatpush1.msra.mxu0 0.0
    %115 = vmatprep.subr.mxu0 0.0
    %116 = vmatpush1.msra.mxu0 0.0
    %117 = vmatprep.mubr.f32.mxu0 0.0
    %118 = vmatmul.mubr.f32.gmra.mrb[0].mxu0 %v44
    %v119 = vpop.f32.mrb[0].mxu0
    %v120 = vadd.f32 %v40, %v119
    %v121 = vpop.f32.mrb[0].mxu0
    %122 = vmatprep.mubr.f32.mxu0 0.0
    %123 = vmatmul.mubr.f32.gmra.mrb[0].mxu0 %v47
    %v124 = vpop.f32.mrb[0].mxu0
    %v125 = vadd.f32 %v40, %v124
    %v126 = vpop.f32.mrb[0].mxu0
    %127 = vdwg.mxu0
    %v128 = vmax.f32 %v120, 0.0
    %v129 = vmax.f32 %v125, 0.0
    %v130 = vld [vmem:[%s4] sm:$0xff]
    %v131 = vld [vmem:[%s4 + $0x8] sm:$0xff]
    %v132 = vld [vmem:[%s4 + $0x10] sm:$0xff]
    %v133 = vld [vmem:[%s4 + $0x18] sm:$0xff]
    %v134 = vld [vmem:[%s5] sm:$0x1]
    %v136 = vlaneseq
    %v137 = vshrl.u32 %v136, 7
    %v138 = vsub.s32 0, %v137
    %v139 = vrot.slane %v134, %v138
    %vm141 = vcmask 261120
    %v143 = vsel %vm141, %v128, 0
    %v146 = vsel %vm141, %v129, 0
    %148 = vmatprep.subr.mxu0 0.0
    %149 = vmatpush1.msra.mxu0 %v130
    %150 = vmatprep.subr.mxu0 0.0
    %151 = vmatpush1.msra.mxu0 %v131
    %152 = vmatprep.subr.mxu0 0.0
    %153 = vmatpush1.msra.mxu0 %v132
    %154 = vmatprep.subr.mxu0 0.0
    %155 = vmatpush1.msra.mxu0 %v133
    %156 = vmatprep.subr.mxu0 0.0
    %157 = vmatpush1.msra.mxu0 0.0
    %158 = vmatprep.subr.mxu0 0.0
    %159 = vmatpush1.msra.mxu0 0.0
    %160 = vmatprep.subr.mxu0 0.0
    %161 = vmatpush1.msra.mxu0 0.0
    %162 = vmatprep.subr.mxu0 0.0
    %163 = vmatpush1.msra.mxu0 0.0
    %164 = vmatprep.subr.mxu0 0.0
    %165 = vmatpush1.msra.mxu0 0.0
    %166 = vmatprep.subr.mxu0 0.0
    %167 = vmatpush1.msra.mxu0 0.0
    %168 = vmatprep.subr.mxu0 0.0
    %169 = vmatpush1.msra.mxu0 0.0
    %170 = vmatprep.subr.mxu0 0.0
    %171 = vmatpush1.msra.mxu0 0.0
    %172 = vmatprep.subr.mxu0 0.0
    %173 = vmatpush1.msra.mxu0 0.0
    %174 = vmatprep.subr.mxu0 0.0
    %175 = vmatpush1.msra.mxu0 0.0
    %176 = vmatprep.subr.mxu0 0.0
    %177 = vmatpush1.msra.mxu0 0.0
    %178 = vmatprep.subr.mxu0 0.0
    %179 = vmatpush1.msra.mxu0 0.0
    %180 = vmatprep.subr.mxu0 0.0
    %181 = vmatpush1.msra.mxu0 0.0
    %182 = vmatprep.subr.mxu0 0.0
    %183 = vmatpush1.msra.mxu0 0.0
    %184 = vmatprep.subr.mxu0 0.0
    %185 = vmatpush1.msra.mxu0 0.0
    %186 = vmatprep.subr.mxu0 0.0
    %187 = vmatpush1.msra.mxu0 0.0
    %188 = vmatprep.subr.mxu0 0.0
    %189 = vmatpush1.msra.mxu0 0.0
    %190 = vmatprep.subr.mxu0 0.0
    %191 = vmatpush1.msra.mxu0 0.0
    %192 = vmatprep.subr.mxu0 0.0
    %193 = vmatpush1.msra.mxu0 0.0
    %194 = vmatprep.subr.mxu0 0.0
    %195 = vmatpush1.msra.mxu0 0.0
    %196 = vmatprep.subr.mxu0 0.0
    %197 = vmatpush1.msra.mxu0 0.0
    %198 = vmatprep.subr.mxu0 0.0
    %199 = vmatpush1.msra.mxu0 0.0
    %200 = vmatprep.subr.mxu0 0.0
    %201 = vmatpush1.msra.mxu0 0.0
    %202 = vmatprep.subr.mxu0 0.0
    %203 = vmatpush1.msra.mxu0 0.0
    %204 = vmatprep.subr.mxu0 0.0
    %205 = vmatpush1.msra.mxu0 0.0
    %206 = vmatprep.subr.mxu0 0.0
    %207 = vmatpush1.msra.mxu0 0.0
    %208 = vmatprep.subr.mxu0 0.0
    %209 = vmatpush1.msra.mxu0 0.0
    %210 = vmatprep.subr.mxu0 0.0
    %211 = vmatpush1.msra.mxu0 0.0
    %212 = vmatprep.mubr.f32.mxu0 0.0
    %213 = vmatmul.mubr.f32.gmra.mrb[0].mxu0 %v143
    %v214 = vpop.f32.mrb[0].mxu0
    %v215 = vadd.f32 %v139, %v214
    %v216 = vpop.f32.mrb[0].mxu0
    %217 = vmatprep.mubr.f32.mxu0 0.0
    %218 = vmatmul.mubr.f32.gmra.mrb[0].mxu0 %v146
    %v219 = vpop.f32.mrb[0].mxu0
    %v220 = vadd.f32 %v139, %v219
    %v221 = vpop.f32.mrb[0].mxu0
    %222 = vdwg.mxu0
    %v223 = vmax.f32 %v215, 0.0
    %v224 = vmax.f32 %v220, 0.0
    %v225 = vld [vmem:[%s6] sm:$0xff]
    %v226 = vld [vmem:[%s6 + $0x8] sm:$0xff]
    %v227 = vld [vmem:[%s6 + $0x10] sm:$0xff]
    %v228 = vld [vmem:[%s6 + $0x18] sm:$0xff]
    %v229 = vld [vmem:[%s7] sm:$0x1]
    %v231 = vlaneseq
    %v232 = vshrl.u32 %v231, 7
    %v233 = vsub.s32 0, %v232
    %v234 = vrot.slane %v229, %v233
    %v237 = vsel %vm141, %v223, 0
    %v240 = vsel %vm141, %v224, 0
    %242 = vmatprep.subr.mxu0 0.0
    %243 = vmatpush1.msra.mxu0 %v225
    %244 = vmatprep.subr.mxu0 0.0
    %245 = vmatpush1.msra.mxu0 %v226
    %246 = vmatprep.subr.mxu0 0.0
    %247 = vmatpush1.msra.mxu0 %v227
    %248 = vmatprep.subr.mxu0 0.0
    %249 = vmatpush1.msra.mxu0 %v228
    %250 = vmatprep.subr.mxu0 0.0
    %251 = vmatpush1.msra.mxu0 0.0
    %252 = vmatprep.subr.mxu0 0.0
    %253 = vmatpush1.msra.mxu0 0.0
    %254 = vmatprep.subr.mxu0 0.0
    %255 = vmatpush1.msra.mxu0 0.0
    %256 = vmatprep.subr.mxu0 0.0
    %257 = vmatpush1.msra.mxu0 0.0
    %258 = vmatprep.subr.mxu0 0.0
    %259 = vmatpush1.msra.mxu0 0.0
    %260 = vmatprep.subr.mxu0 0.0
    %261 = vmatpush1.msra.mxu0 0.0
    %262 = vmatprep.subr.mxu0 0.0
    %263 = vmatpush1.msra.mxu0 0.0
    %264 = vmatprep.subr.mxu0 0.0
    %265 = vmatpush1.msra.mxu0 0.0
    %266 = vmatprep.subr.mxu0 0.0
    %267 = vmatpush1.msra.mxu0 0.0
    %268 = vmatprep.subr.mxu0 0.0
    %269 = vmatpush1.msra.mxu0 0.0
    %270 = vmatprep.subr.mxu0 0.0
    %271 = vmatpush1.msra.mxu0 0.0
    %272 = vmatprep.subr.mxu0 0.0
    %273 = vmatpush1.msra.mxu0 0.0
    %274 = vmatprep.subr.mxu0 0.0
    %275 = vmatpush1.msra.mxu0 0.0
    %276 = vmatprep.subr.mxu0 0.0
    %277 = vmatpush1.msra.mxu0 0.0
    %278 = vmatprep.subr.mxu0 0.0
    %279 = vmatpush1.msra.mxu0 0.0
    %280 = vmatprep.subr.mxu0 0.0
    %281 = vmatpush1.msra.mxu0 0.0
    %282 = vmatprep.subr.mxu0 0.0
    %283 = vmatpush1.msra.mxu0 0.0
    %284 = vmatprep.subr.mxu0 0.0
    %285 = vmatpush1.msra.mxu0 0.0
    %286 = vmatprep.subr.mxu0 0.0
    %287 = vmatpush1.msra.mxu0 0.0
    %288 = vmatprep.subr.mxu0 0.0
    %289 = vmatpush1.msra.mxu0 0.0
    %290 = vmatprep.subr.mxu0 0.0
    %291 = vmatpush1.msra.mxu0 0.0
    %292 = vmatprep.subr.mxu0 0.0
    %293 = vmatpush1.msra.mxu0 0.0
    %294 = vmatprep.subr.mxu0 0.0
    %295 = vmatpush1.msra.mxu0 0.0
    %296 = vmatprep.subr.mxu0 0.0
    %297 = vmatpush1.msra.mxu0 0.0
    %298 = vmatprep.subr.mxu0 0.0
    %299 = vmatpush1.msra.mxu0 0.0
    %300 = vmatprep.subr.mxu0 0.0
    %301 = vmatpush1.msra.mxu0 0.0
    %302 = vmatprep.subr.mxu0 0.0
    %303 = vmatpush1.msra.mxu0 0.0
    %304 = vmatprep.subr.mxu0 0.0
    %305 = vmatpush1.msra.mxu0 0.0
    %306 = vmatprep.mubr.f32.mxu0 0.0
    %307 = vmatmul.mubr.f32.gmra.mrb[0].mxu0 %v237
    %v308 = vpop.f32.mrb[0].mxu0
    %v309 = vadd.f32 %v234, %v308
    %v310 = vpop.f32.mrb[0].mxu0
    %311 = vmatprep.mubr.f32.mxu0 0.0
    %312 = vmatmul.mubr.f32.gmra.mrb[0].mxu0 %v240
    %v313 = vpop.f32.mrb[0].mxu0
    %v314 = vadd.f32 %v234, %v313
    %v315 = vpop.f32.mrb[0].mxu0
    %316 = vdwg.mxu0
    %v317 = vld [vmem:[%s1] sm:$0xf]
    %v318 = vld [vmem:[%s1 + $0x4] sm:$0xf]
    %v319 = vunpack.c.l.bf16 %v317
    %v320 = vunpack.c.l.bf16 %v318
    %v321 = vsub.f32 %v309, %v319
    %v322 = vsub.f32 %v314, %v320
    %v323 = vlaneseq
    %v324 = vshrl.u32 %v323, 7
    %v325 = vadd.s32 %v324, 8
    %s326 = smul.u32 0, 16
    %v327 = vstv %s326
    %v328 = vadd.s32 %v324, %v327
    %v329 = vadd.s32 %v325, %v327
    %vm330 = vcmp.lt.s32.totalorder %v328, 8
    %vm331 = vcmp.lt.s32.totalorder %v329, 8
    %v332 = vsel %vm330, %v321, 0.0
    %v333 = vsel %vm331, %v322, 0.0
    %v334 = vmul.f32 %v332, %v332
    %v335 = vmul.f32 %v333, %v333
    %vm336 = vcmask 72704
    %v337 = vsel %vm336, %v334, 0.0
    %v338 = vsel %vm336, %v335, 0.0
    %v339 = vadd.f32 %v337, %v338
    %340 = vadd.xlane.f32.xlu0 %v339
    %v341 = vpop.xlane.xlu0 %340
    %v342 = vrot.slane %v341, 4
    %v343 = vadd.f32 %v341, %v342
    %v344 = vrot.slane %v343, 2
    %v345 = vadd.f32 %v343, %v344
    %v346 = vrot.slane %v345, 1
    %v347 = vadd.f32 %v345, %v346
    %s348 = vtos %v347
    %s349 = scalar_lea.smem [#allocation2], 0
    %350 = sst [smem:[%s349]] %s348
    // Predicated region
    $region34: #{tpu_custom_call.1} parent=1 // pred_check
      _
    $region35: #{tpu_custom_call.1} parent=1 // pred_check_branch
      %352 = sbr.rel (0) target = $region37
    $region36: #{tpu_custom_call.1} parent=1 // pred_region
      %s354 = ssub.s32 16, 16
      %355 = vsyncadd [#allocation3], %s354
      %358 = dma.smem_to_hbm [#allocation2], 16, %s8, [#allocation3]
    $region37: #{tpu_custom_call.1} parent=1 // pred_fallthru
      _
    // Predicated region
    $region38: #{tpu_custom_call.1} parent=1 // pred_check
      _
    $region39: #{tpu_custom_call.1} parent=1 // pred_check_branch
      %360 = sbr.rel (0) target = $region41
    $region40: #{tpu_custom_call.1} parent=1 // pred_region
      %361 = dma.done [#allocation3], 16
    $region41: #{tpu_custom_call.1} parent=1 // pred_fallthru
      _
    %362 = sfence
    %363 = vsyncpa [#allocation3], 1

</llo_original>
